<compile_context>
chip_gen: v7x
topology: tpu7x:2x2x1
jax: 0.10.0
libtpu: 0.0.40
codegen_flags: <defaults>
</compile_context>

<pallas_src>
import functools

import numpy as np
import jax
import jax.numpy as jnp
from jax import lax
from jax.experimental import pallas as pl
from jax.experimental.pallas import tpu as pltpu

COMPUTE_DTYPE = jnp.bfloat16   # matmul-operand / activation dtype (accum f32)


# -----------------------------------------------------------------------------
# Small helpers
# -----------------------------------------------------------------------------
def _nbytes(shape, dtype):
    return int(np.prod(shape)) * jnp.dtype(dtype).itemsize


@functools.lru_cache(maxsize=None)
def _vmem_budget_bytes():
    """~85% of physical VMEM; conservative 54 MiB fallback (valid on v7x)."""
    cap = None
    try:
        info = pltpu.get_tpu_info()
        cap = getattr(info, "vmem_capacity_bytes", None)
    except Exception:
        cap = None
    if not cap:
        cap = 64 << 20
    return int(cap * 0.85)


def _vmem_limit(block_bytes, scratch_bytes=0):
    est = 2 * int(block_bytes) + int(scratch_bytes) + (8 << 20)
    return int(min(max(est, 32 << 20), _vmem_budget_bytes()))


@functools.lru_cache(maxsize=None)
def _row_tile_size():
    # Bigger row tiles on 128 MiB chips (v5e/v6e) cut expert-weight re-streams.
    return 1024 if _vmem_budget_bytes() >= (80 << 20) else 512


def _row_tile(m):
    rt = _row_tile_size()
    return m if m <= rt else rt


def _pad_rows(x, tm):
    m = x.shape[0]
    mp = ((m + tm - 1) // tm) * tm
    if mp != m:
        pad = jnp.zeros((mp - m,) + x.shape[1:], x.dtype)
        x = jnp.concatenate([x, pad], axis=0)
    return x, m


def _maybe_buffered_spec(shape, index_map, deep):
    """Expert-weight BlockSpec with optional 3-deep multi-buffering."""
    if deep and hasattr(pl, "Buffered"):
        try:
            return pl.BlockSpec(shape, index_map, pipeline_mode=pl.Buffered(3))
        except TypeError:
            pass
    return pl.BlockSpec(shape, index_map)


# -----------------------------------------------------------------------------
# Kernel 1: embedding projection (+ fused emb_scaler and pe+ple add)
# -----------------------------------------------------------------------------
def _embed_kernel(x_ref, w_ref, b_ref, add_ref, o_ref):
    acc = jnp.dot(x_ref[...], w_ref[...], preferred_element_type=jnp.float32)
    acc = acc + b_ref[...].astype(jnp.float32) + add_ref[...].astype(jnp.float32)
    o_ref[...] = acc.astype(o_ref.dtype)


def embed_project(x, w, b, add, *, compute_dtype=COMPUTE_DTYPE):
    """(x @ w + b + add) row-tiled; w/b already pre-scaled by 2**emb_scaler."""
    m, k = x.shape
    n = w.shape[1]
    tm = _row_tile(m)
    xp, m0 = _pad_rows(x, tm)
    addp, _ = _pad_rows(add, tm)
    nt = xp.shape[0] // tm

    blk = (_nbytes((tm, k), compute_dtype) + _nbytes((k, n), compute_dtype)
           + _nbytes((1, n), jnp.float32) + _nbytes((tm, n), jnp.float32)
           + _nbytes((tm, n), compute_dtype))
    out = pl.pallas_call(
        _embed_kernel,
        out_shape=jax.ShapeDtypeStruct((xp.shape[0], n), compute_dtype),
        grid=(nt,),
        in_specs=[
            pl.BlockSpec((tm, k), lambda i: (i, 0)),
            pl.BlockSpec((k, n), lambda i: (0, 0)),
            pl.BlockSpec((1, n), lambda i: (0, 0)),
            pl.BlockSpec((tm, n), lambda i: (i, 0)),
        ],
        out_specs=pl.BlockSpec((tm, n), lambda i: (i, 0)),
        compiler_params=pltpu.CompilerParams(
            dimension_semantics=("parallel",),
            vmem_limit_bytes=_vmem_limit(blk)),
    )(xp.astype(compute_dtype), w.astype(compute_dtype), b, addp)
    return out[:m0]


# -----------------------------------------------------------------------------
# Kernel 2: fused attention block (QKV + attention + out-proj + residual + LN1)
# -----------------------------------------------------------------------------
def _attn_block_kernel(x_ref, mask_ref, wqkv_ref, bqkv_ref, wo_ref, bo_ref,
                       g_ref, b_ref, o_ref, *, heads, scale, eps):
    cdt = COMPUTE_DTYPE
    x = x_ref[0]                                  # (T, D) bf16
    t, d = x.shape
    hd = d // heads

    # Fused QKV projection (single MXU matmul, bf16 operands, f32 accum).
    qkv = (jnp.dot(x, wqkv_ref[...], preferred_element_type=jnp.float32)
           + bqkv_ref[...].astype(jnp.float32))   # (T, 3D) f32

    # bf16 operands for the attention-core MXU matmuls; scale folded into q.
    q3 = (qkv[:, 0:d] * scale).astype(cdt).reshape(t, heads, hd)
    k3 = qkv[:, d:2 * d].astype(cdt).reshape(t, heads, hd)
    v3 = qkv[:, 2 * d:3 * d].astype(cdt).reshape(t, heads, hd)

    # Key-padding mask hoisted once as an additive bias (finite: no NaNs).
    kpad = mask_ref[0]                            # (1, T) f32; 1.0 => padded key
    kbias = jnp.where(kpad > 0.5, jnp.float32(-1e30), jnp.float32(0.0))

    # Head-batched attention (no per-head lane slicing / concat).
    s = jnp.einsum("qhd,khd->hqk", q3, k3,
                   preferred_element_type=jnp.float32)          # (H, T, T) f32
    s = s + kbias                                 # broadcast over heads/queries
    m = jnp.max(s, axis=-1, keepdims=True)
    p = jnp.exp(s - m)
    p = p * pl.reciprocal(jnp.sum(p, axis=-1, keepdims=True), approx=True)
    ctx = jnp.einsum("hqk,khd->qhd", p.astype(cdt), v3,
                     preferred_element_type=jnp.float32)        # (T, H, hd)
    attn = ctx.reshape(t, d)

    # Output projection + residual + LayerNorm1 (f32 math).
    attn = (jnp.dot(attn.astype(cdt), wo_ref[...],
                    preferred_element_type=jnp.float32)
            + bo_ref[...].astype(jnp.float32))
    h_res = x.astype(jnp.float32) + attn          # dropout1 = identity (eval)
    mu = jnp.mean(h_res, axis=-1, keepdims=True)
    var = jnp.mean((h_res - mu) ** 2, axis=-1, keepdims=True)
    y = (h_res - mu) * lax.rsqrt(var + eps)
    o_ref[0] = (y * g_ref[...].astype(jnp.float32)
                + b_ref[...].astype(jnp.float32)).astype(o_ref.dtype)


def attention_block(x, pad_mask_f, lp, *, heads, eps=1e-5,
                    compute_dtype=COMPUTE_DTYPE):
    bsz, t, d = x.shape
    assert d % heads == 0
    scale = float(d // heads) ** (-0.5)
    mask3 = pad_mask_f.reshape(bsz, 1, t)

    wqkv = lp["w_qkv"].astype(compute_dtype)      # [D, 3D] (pre-fused in init)
    wo = lp["wo"].astype(compute_dtype)

    blk = (_nbytes((1, t, d), compute_dtype) + _nbytes((1, 1, t), jnp.float32)
           + _nbytes((d, 3 * d), compute_dtype) + _nbytes((1, 3 * d), jnp.float32)
           + _nbytes((d, d), compute_dtype) + 3 * _nbytes((1, d), jnp.float32)
           + _nbytes((1, t, d), compute_dtype)
           + 2 * _nbytes((heads, t, t), jnp.float32))   # in-kernel score buffers

    return pl.pallas_call(
        functools.partial(_attn_block_kernel, heads=heads, scale=scale, eps=eps),
        out_shape=jax.ShapeDtypeStruct((bsz, t, d), compute_dtype),
        grid=(bsz,),
        in_specs=[
            pl.BlockSpec((1, t, d), lambda i: (i, 0, 0)),
            pl.BlockSpec((1, 1, t), lambda i: (i, 0, 0)),
            pl.BlockSpec((d, 3 * d), lambda i: (0, 0)),
            pl.BlockSpec((1, 3 * d), lambda i: (0, 0)),
            pl.BlockSpec((d, d), lambda i: (0, 0)),
            pl.BlockSpec((1, d), lambda i: (0, 0)),
            pl.BlockSpec((1, d), lambda i: (0, 0)),
            pl.BlockSpec((1, d), lambda i: (0, 0)),
        ],
        out_specs=pl.BlockSpec((1, t, d), lambda i: (i, 0, 0)),
        compiler_params=pltpu.CompilerParams(
            dimension_semantics=("parallel",),
            vmem_limit_bytes=_vmem_limit(blk)),
    )(x.astype(compute_dtype), mask3, wqkv, lp["b_qkv"], wo, lp["bo"],
      lp["ln1_g"], lp["ln1_b"])


# -----------------------------------------------------------------------------
# Kernel 3: fused MoE block (gating + streamed experts + residual + LN2)
#   grid = (row_tiles "parallel", experts "arbitrary"); one expert's weights
#   are DMA'd per grid step; running sum kept in a VMEM accumulator.
# -----------------------------------------------------------------------------
def _moe_block_kernel(x_ref, gw_ref, gb_ref, w1_ref, b1_ref, w2_ref, b2_ref,
                      g_ref, bln_ref, o_ref, acc_ref, gate_ref, *, eps):
    e = pl.program_id(1)
    n_e = pl.num_programs(1)
    x = x_ref[...]                                 # (tm, D) bf16

    @pl.when(e == 0)
    def _init():
        # Gating softmax (exact division — these weights scale expert outputs)
        # + exact top-2 with lowest-index tie-break (matches torch.topk).
        logits = (jnp.dot(x, gw_ref[...], preferred_element_type=jnp.float32)
                  + gb_ref[...].astype(jnp.float32))            # (tm, E)
        m = jnp.max(logits, axis=-1, keepdims=True)
        ex = jnp.exp(logits - m)
        scores = ex / jnp.sum(ex, axis=-1, keepdims=True)
        eidx = lax.broadcasted_iota(jnp.float32, scores.shape, 1)
        big = float(scores.shape[-1])
        max1 = jnp.max(scores, axis=-1, keepdims=True)
        idx1 = jnp.min(jnp.where(scores == max1, eidx, big), axis=-1, keepdims=True)
        masked = jnp.where(eidx == idx1, -jnp.inf, scores)
        max2 = jnp.max(masked, axis=-1, keepdims=True)
        idx2 = jnp.min(jnp.where(masked == max2, eidx, big), axis=-1, keepdims=True)
        # Single (tm, E) gate scratch: column e holds the gate weight if expert
        # e is in this token's top-2, else 0 (raw softmax probs, like the ref).
        gate_ref[...] = (jnp.where(eidx == idx1, max1, 0.0)
                         + jnp.where(eidx == idx2, max2, 0.0))
        acc_ref[...] = jnp.zeros_like(acc_ref)

    # Expert `e` FFN (streamed weights): ReLU MLP, bf16 operands, f32 accum.
    h = (jnp.dot(x, w1_ref[0], preferred_element_type=jnp.float32)
         + b1_ref[0].astype(jnp.float32))                       # (tm, F)
    h = jnp.maximum(h, 0.0)
    y = (jnp.dot(h.astype(w2_ref.dtype), w2_ref[0],
                 preferred_element_type=jnp.float32)
         + b2_ref[0].astype(jnp.float32))                       # (tm, D)

    eidx = lax.broadcasted_iota(jnp.float32, gate_ref.shape, 1)
    w_e = jnp.sum(jnp.where(eidx == e.astype(jnp.float32), gate_ref[...], 0.0),
                  axis=-1, keepdims=True)                       # (tm, 1)
    acc_ref[...] += w_e * y

    @pl.when(e == n_e - 1)
    def _finalize():
        h_res = x.astype(jnp.float32) + acc_ref[...]   # dropout2 = identity
        mu = jnp.mean(h_res, axis=-1, keepdims=True)
        var = jnp.mean((h_res - mu) ** 2, axis=-1, keepdims=True)
        yn = (h_res - mu) * lax.rsqrt(var + eps)
        o_ref[...] = (yn * g_ref[...].astype(jnp.float32)
                      + bln_ref[...].astype(jnp.float32)).astype(o_ref.dtype)


def moe_block(x, lp, *, eps=1e-5, compute_dtype=COMPUTE_DTYPE):
    m, d = x.shape
    n_exp, _, f = lp["e_w1"].shape
    tm = _row_tile(m)
    xp, m0 = _pad_rows(x, tm)
    nt = xp.shape[0] // tm

    w_bytes = _nbytes((d, f), compute_dtype) + _nbytes((f, d), compute_dtype)
    blk = (_nbytes((tm, d), compute_dtype) + _nbytes((d, n_exp), compute_dtype)
           + _nbytes((1, n_exp), jnp.float32)
           + w_bytes + _nbytes((1, f), jnp.float32) + _nbytes((1, d), jnp.float32)
           + 2 * _nbytes((1, d), jnp.float32) + _nbytes((tm, d), compute_dtype))
    scratch = (_nbytes((tm, d), jnp.float32)
               + _nbytes((tm, max(n_exp, 128)), jnp.float32))
    # Allow 3-deep buffering of expert weights only if one extra copy fits.
    deep = (n_exp >= 3) and (2 * blk + scratch + w_bytes + (8 << 20)
                             <= _vmem_budget_bytes())

    out = pl.pallas_call(
        functools.partial(_moe_block_kernel, eps=eps),
        out_shape=jax.ShapeDtypeStruct((xp.shape[0], d), compute_dtype),
        grid=(nt, n_exp),
        in_specs=[
            pl.BlockSpec((tm, d), lambda i, e: (i, 0)),
            pl.BlockSpec((d, n_exp), lambda i, e: (0, 0)),
            pl.BlockSpec((1, n_exp), lambda i, e: (0, 0)),
            _maybe_buffered_spec((1, d, f), lambda i, e: (e, 0, 0), deep),
            pl.BlockSpec((1, 1, f), lambda i, e: (e, 0, 0)),
            _maybe_buffered_spec((1, f, d), lambda i, e: (e, 0, 0), deep),
            pl.BlockSpec((1, 1, d), lambda i, e: (e, 0, 0)),
            pl.BlockSpec((1, d), lambda i, e: (0, 0)),
            pl.BlockSpec((1, d), lambda i, e: (0, 0)),
        ],
        out_specs=pl.BlockSpec((tm, d), lambda i, e: (i, 0)),
        scratch_shapes=[
            pltpu.VMEM((tm, d), jnp.float32),      # expert-mix accumulator
            pltpu.VMEM((tm, n_exp), jnp.float32),  # packed top-2 gate weights
        ],
        compiler_params=pltpu.CompilerParams(
            dimension_semantics=("parallel", "arbitrary"),
            vmem_limit_bytes=_vmem_limit(blk + (w_bytes if deep else 0),
                                         scratch)),
    )(xp.astype(compute_dtype), lp["gate_w"].astype(compute_dtype), lp["gate_b"],
      lp["e_w1"].astype(compute_dtype), lp["e_b1"],
      lp["e_w2"].astype(compute_dtype), lp["e_b2"],
      lp["ln2_g"], lp["ln2_b"])
    return out[:m0]


# -----------------------------------------------------------------------------
# Glue: fractional positional encoding tables, parameter init, forward pass
# -----------------------------------------------------------------------------
def build_pe_table(d_half, resolution):
    x = np.arange(resolution, dtype=np.float64).reshape(resolution, 1)
    idx = np.arange(d_half, dtype=np.float64)
    pe = np.zeros((resolution, d_half), dtype=np.float64)
    pe[:, 0::2] = np.sin(x / np.power(50.0, 2 * idx[0::2] / d_half))
    pe[:, 1::2] = np.cos(x / np.power(50.0, 2 * idx[1::2] / d_half))
    return jnp.asarray(pe, dtype=jnp.float32)


def frac_encode(frac, table, resolution, log10):
    x = frac.astype(jnp.float32)
    if log10:
        x = 0.0025 * jnp.log2(x) ** 2
        x = jnp.minimum(x, 1.0)
    x = jnp.maximum(x, 1.0 / resolution)
    idx = jnp.round(x * resolution).astype(jnp.int32) - 1
    idx = jnp.clip(idx, 0, resolution - 1)        # explicit bounds
    return table[idx]                             # gather (glue, not hot path)


def _lin_init(key, fan_in, fan_out):
    kw, kb = jax.random.split(key)
    bound = 1.0 / np.sqrt(fan_in)
    w = jax.random.uniform(kw, (fan_in, fan_out), jnp.float32, -bound, bound)
    b = jax.random.uniform(kb, (1, fan_out), jnp.float32, -bound, bound)
    return w, b


def init_params(key, *, d_model, n_layers, heads, num_experts, dim_ff,
                feat_size, vocab, resolution=5000):
    params = {"d_model": d_model, "heads": heads, "num_layers": n_layers}
    keys = jax.random.split(key, 4 + n_layers)

    cbfv = jax.random.normal(keys[0], (vocab, feat_size), jnp.float32)
    params["cbfv"] = jnp.concatenate(
        [jnp.zeros((1, feat_size), jnp.float32), cbfv], axis=0)
    params["fc_w"], params["fc_b"] = _lin_init(keys[1], feat_size, d_model)

    params["pe_table"] = build_pe_table(d_model // 2, resolution)
    params["ple_table"] = build_pe_table(d_model // 2, resolution)
    params["resolution"] = resolution

    params["emb_scaler"] = jnp.float32(1.0)
    params["pos_scaler"] = jnp.float32(1.0)
    params["pos_scaler_log"] = jnp.float32(1.0)

    layers = []
    for li in range(n_layers):
        lk = jax.random.split(keys[4 + li], 8)
        lp = {}
        wq, bq = _lin_init(lk[0], d_model, d_model)
        wk, bk = _lin_init(lk[1], d_model, d_model)
        wv, bv = _lin_init(lk[2], d_model, d_model)
        lp["w_qkv"] = jnp.concatenate([wq, wk, wv], axis=1)   # fused [D, 3D]
        lp["b_qkv"] = jnp.concatenate([bq, bk, bv], axis=1)   # fused [1, 3D]
        lp["wo"], lp["bo"] = _lin_init(lk[3], d_model, d_model)
        lp["ln1_g"] = jnp.ones((1, d_model), jnp.float32)
        lp["ln1_b"] = jnp.zeros((1, d_model), jnp.float32)
        lp["ln2_g"] = jnp.ones((1, d_model), jnp.float32)
        lp["ln2_b"] = jnp.zeros((1, d_model), jnp.float32)
        lp["gate_w"], lp["gate_b"] = _lin_init(lk[4], d_model, num_experts)
        ek = jax.random.split(lk[5], num_experts)
        w1s, b1s, w2s, b2s = [], [], [], []
        for e in range(num_experts):
            ek1, ek2 = jax.random.split(ek[e])
            w1, b1 = _lin_init(ek1, d_model, dim_ff)
            w2, b2 = _lin_init(ek2, dim_ff, d_model)
            w1s.append(w1); b1s.append(b1); w2s.append(w2); b2s.append(b2)
        lp["e_w1"] = jnp.stack(w1s)            # [E, D, F]
        lp["e_b1"] = jnp.stack(b1s)            # [E, 1, F]
        lp["e_w2"] = jnp.stack(w2s)            # [E, F, D]
        lp["e_b2"] = jnp.stack(b2s)            # [E, 1, D]
        layers.append(lp)
    params["layers"] = layers
    return params


def encoder_layer_forward(x, pad_mask_f, lp, heads):
    bsz, t, d = x.shape
    h = attention_block(x, pad_mask_f, lp, heads=heads)        # [B,T,D] bf16
    h = moe_block(h.reshape(bsz * t, d), lp)                   # [B*T,D] bf16
    return h.reshape(bsz, t, d)


def encoder_moe_forward(params, src, frac, *, fractional=False, attn=True):
    bsz, t = src.shape
    d = params["d_model"]
    heads = params["heads"]
    res = params["resolution"]
    assert d % 2 == 0

    pad_mask = frac == 0.0
    pad_mask_f = pad_mask.astype(jnp.float32)

    # ---- Fractional encoders (glue: table gathers) ----
    pe_scaler = 2.0 ** ((1.0 - params["pos_scaler"]) ** 2)
    ple_scaler = 2.0 ** ((1.0 - params["pos_scaler_log"]) ** 2)
    pe_half = frac_encode(frac, params["pe_table"], res, log10=False) * pe_scaler
    ple_half = frac_encode(frac, params["ple_table"], res, log10=True) * ple_scaler
    if attn:
        pos_add = jnp.concatenate([pe_half, ple_half], axis=-1)   # pe + ple
    else:
        pos_add = jnp.zeros((bsz, t, d), jnp.float32)

    # ---- Embedder: emb_scaler folded into fc weights; pe+ple fused in-kernel
    m2v = params["cbfv"][src]                                   # gather (glue)
    feat = m2v.shape[-1]
    emb_scale = 2.0 ** params["emb_scaler"]
    fc_w = params["fc_w"] * emb_scale
    fc_b = params["fc_b"] * emb_scale
    x = embed_project(m2v.reshape(bsz * t, feat), fc_w, fc_b,
                      pos_add.reshape(bsz * t, d)).reshape(bsz, t, d)

    if attn:
        for lp in params["layers"]:
            x = encoder_layer_forward(x, pad_mask_f, lp, heads)

    if fractional:
        x = x * frac[..., None]

    x = jnp.where(pad_mask[..., None], 0.0, x.astype(jnp.float32))
    return x


# -----------------------------------------------------------------------------
if __name__ == "__main__":
    D_MODEL = 32
    N_LAYERS = 2
    HEADS = 4
    NUM_EXPERTS = 4
    DIM_FF = 64
    FEAT_SIZE = 20
    VOCAB = 10
    B, T = 2, 8

    key = jax.random.PRNGKey(0)
    kp, ks, kf = jax.random.split(key, 3)

    params = init_params(
        kp, d_model=D_MODEL, n_layers=N_LAYERS, heads=HEADS,
        num_experts=NUM_EXPERTS, dim_ff=DIM_FF,
        feat_size=FEAT_SIZE, vocab=VOCAB,
    )

    src = jax.random.randint(ks, (B, T), 1, VOCAB + 1)              # element ids
    frac = jax.random.uniform(kf, (B, T), jnp.float32, 0.05, 1.0)   # fractions
    frac = frac.at[:, -2:].set(0.0)                                 # padded slots

    out = encoder_moe_forward(params, src, frac)
    jax.block_until_ready(out)
    assert out.shape == (B, T, D_MODEL)
    assert bool(jnp.all(jnp.isfinite(out)))
    print("KERNEL_OK")
</pallas_src>

<mosaic_0001>
module attributes {stable_mosaic.version = 11 : i64} {
  func.func @_embed_kernel(%arg0: i32, %arg1: memref<16x20xbf16, #tpu.memory_space<vmem>>, %arg2: memref<20x32xbf16, #tpu.memory_space<vmem>>, %arg3: memref<1x32xf32, #tpu.memory_space<vmem>>, %arg4: memref<16x32xf32, #tpu.memory_space<vmem>>, %arg5: memref<16x32xbf16, #tpu.memory_space<vmem>>) attributes {dimension_semantics = [#tpu.dimension_semantics<parallel>], iteration_bounds = array<i64: 1>, scalar_prefetch = 0 : i64, scratch_operands = 0 : i64, tpu.core_type = #tpu.core_type<tc>, window_params = [{transform_indices = @transform_0, window_bounds = array<i64: 16, 20>}, {pipeline_mode = #tpu.pipeline_mode<synchronous>, transform_indices = @transform_1, window_bounds = array<i64: 20, 32>}, {pipeline_mode = #tpu.pipeline_mode<synchronous>, transform_indices = @transform_2, window_bounds = array<i64: 1, 32>}, {transform_indices = @transform_3, window_bounds = array<i64: 16, 32>}, {transform_indices = @transform_4, window_bounds = array<i64: 16, 32>}]} {
    %c0 = arith.constant 0 : index
    %c0_0 = arith.constant 0 : index
    %0 = vector.load %arg1[%c0, %c0_0] : memref<16x20xbf16, #tpu.memory_space<vmem>>, vector<16x20xbf16>
    %c0_1 = arith.constant 0 : index
    %c0_2 = arith.constant 0 : index
    %1 = vector.load %arg2[%c0_1, %c0_2] : memref<20x32xbf16, #tpu.memory_space<vmem>>, vector<20x32xbf16>
    %cst = arith.constant dense<0.000000e+00> : vector<16x32xf32>
    %2 = tpu.matmul %0, %1, %cst {dimension_numbers = #tpu.dot_dimension_numbers<[1], [0], [0], [1], [0, 0, 1, 1], [], []>} : vector<16x20xbf16>, vector<20x32xbf16>, vector<16x32xf32> -> vector<16x32xf32>
    %c0_3 = arith.constant 0 : index
    %c0_4 = arith.constant 0 : index
    %3 = vector.load %arg3[%c0_3, %c0_4] : memref<1x32xf32, #tpu.memory_space<vmem>>, vector<1x32xf32>
    %4 = vector.broadcast %3 : vector<1x32xf32> to vector<16x32xf32>
    %5 = arith.addf %2, %4 : vector<16x32xf32>
    %c0_5 = arith.constant 0 : index
    %c0_6 = arith.constant 0 : index
    %6 = vector.load %arg4[%c0_5, %c0_6] : memref<16x32xf32, #tpu.memory_space<vmem>>, vector<16x32xf32>
    %7 = arith.addf %5, %6 : vector<16x32xf32>
    %8 = arith.truncf %7 : vector<16x32xf32> to vector<16x32xbf16>
    %c0_7 = arith.constant 0 : index
    %c0_8 = arith.constant 0 : index
    %9 = vector.load %arg5[%c0_7, %c0_8] : memref<16x32xbf16, #tpu.memory_space<vmem>>, vector<16x32xbf16>
    tpu.vector_store %arg5[%c0_7, %c0_8], %8 {strides = array<i32>} : memref<16x32xbf16, #tpu.memory_space<vmem>>, vector<16x32xbf16>,
    return
  }
  func.func @transform_0(%arg0: i32) -> (i32, i32) {
    %c0_i32 = arith.constant 0 : i32
    %c0_i32_0 = arith.constant 0 : i32
    return %arg0, %c0_i32 : i32, i32
  }
  func.func @transform_1(%arg0: i32) -> (i32, i32) {
    %c0_i32 = arith.constant 0 : i32
    %c0_i32_0 = arith.constant 0 : i32
    %c0_i32_1 = arith.constant 0 : i32
    return %c0_i32, %c0_i32_0 : i32, i32
  }
  func.func @transform_2(%arg0: i32) -> (i32, i32) {
    %c0_i32 = arith.constant 0 : i32
    %c0_i32_0 = arith.constant 0 : i32
    %c0_i32_1 = arith.constant 0 : i32
    return %c0_i32, %c0_i32_0 : i32, i32
  }
  func.func @transform_3(%arg0: i32) -> (i32, i32) {
    %c0_i32 = arith.constant 0 : i32
    %c0_i32_0 = arith.constant 0 : i32
    return %arg0, %c0_i32 : i32, i32
  }
  func.func @transform_4(%arg0: i32) -> (i32, i32) {
    %c0_i32 = arith.constant 0 : i32
    %c0_i32_0 = arith.constant 0 : i32
    return %arg0, %c0_i32 : i32, i32
  }
}

</mosaic_0001>

<llo_original>
// kernel: tpu_custom_call.1
$region0: #{tpu_custom_call.1}
  #allocation0 [shape = 'u32[]', space=smem, size = 0x4, offset = 0x4, fixed_abs, tag = 'smem constant byte address 0x4 - core index']
  #allocation1 [shape = 'u32[144,128]{1,0:T(1,128)}', space=vmem, size = 0x12000, scoped, tag = 'internal scratch']
  %s0 = inlined_call_operand.hbm [shape: bf16[16,20], index: 0, kind: input, shape index: {}]
  %s1 = inlined_call_operand.hbm [shape: bf16[20,32], index: 1, kind: input, shape index: {}]
  %s2 = inlined_call_operand.vmem [shape: f32[1,32], index: 2, kind: input, shape index: {}]
  %s3 = inlined_call_operand.hbm [shape: f32[16,32], index: 3, kind: input, shape index: {}]
  %s4 = inlined_call_operand.hbm [shape: bf16[16,32], index: 4, kind: output, shape index: {}]
  %s5 = sld [smem:[#allocation0]]
  $region38: #{tpu_custom_call.1} parent=0
    _
  %s7 = ssub.s32 1, %s5
  %s8 = scalar_select 0, %s7, %s5
  $region1: #{tpu_custom_call.1} parent=0
    #allocation2 [shape = 'u8[4096]{0}', space=vmem, size = 0x1000, scoped, tag = 'input window, operand 0, single buffered']
    #allocation3 [shape = 's32[1]{0}', space=sflag, size = 0x4, scoped, tag = 'scoped memory for tpu_custom_call.1']
    #allocation4 [shape = 's32[1]{0}', space=sflag, size = 0x4, scoped, tag = 'scoped memory for tpu_custom_call.1']
    #allocation5 [shape = 'u8[6144]{0}', space=vmem, size = 0x1800, scoped, tag = 'input window, operand 1, single buffered']
    #allocation6 [shape = 's32[1]{0}', space=sflag, size = 0x4, scoped, tag = 'scoped memory for tpu_custom_call.1']
    #allocation7 [shape = 'u8[8192]{0}', space=vmem, size = 0x2000, scoped, tag = 'input window, operand 3, single buffered']
    #allocation8 [shape = 'u8[4096]{0}', space=vmem, size = 0x1000, scoped, tag = 'output window, operand 0, single buffered']
    %9 = vsyncpa [#allocation3], 0
    %10 = vsyncpa [#allocation6], 0
    %11 = vsyncpa [#allocation4], 0
    // Predicated region
    $region2: #{tpu_custom_call.1} parent=1 // pred_check
      _
    $region3: #{tpu_custom_call.1} parent=1 // pred_check_branch
      %13 = sbr.rel (0) target = $region5
    $region4: #{tpu_custom_call.1} parent=1 // pred_region
      %s15 = ssub.s32 128, 128
      %16 = vsyncadd [#allocation3], %s15
      %s17 = sshll.u32 [#allocation2], 4
      %s18 = int_to_ptr.vmem [resolvable:$true] %s17
      %23 = dma.hbm_to_vmem [thread:$0]  %s0, 128, %s18, [#allocation3], 64, 64, 4
    $region5: #{tpu_custom_call.1} parent=1 // pred_fallthru
      _
    // Predicated region
    $region6: #{tpu_custom_call.1} parent=1 // pred_check
      _
    $region7: #{tpu_custom_call.1} parent=1 // pred_check_branch
      %25 = sbr.rel (0) target = $region9
    $region8: #{tpu_custom_call.1} parent=1 // pred_region
      %s27 = ssub.s32 192, 192
      %28 = vsyncadd [#allocation6], %s27
      %s29 = sshll.u32 [#allocation5], 4
      %s30 = int_to_ptr.vmem [resolvable:$true] %s29
      %35 = dma.hbm_to_vmem [thread:$0]  %s1, 192, %s30, [#allocation6], 64, 64, 4
    $region9: #{tpu_custom_call.1} parent=1 // pred_fallthru
      _
    // Predicated region
    $region10: #{tpu_custom_call.1} parent=1 // pred_check
      _
    $region11: #{tpu_custom_call.1} parent=1 // pred_check_branch
      %37 = sbr.rel (0) target = $region13
    $region12: #{tpu_custom_call.1} parent=1 // pred_region
      _
    $region13: #{tpu_custom_call.1} parent=1 // pred_fallthru
      _
    // Predicated region
    $region14: #{tpu_custom_call.1} parent=1 // pred_check
      _
    $region15: #{tpu_custom_call.1} parent=1 // pred_check_branch
      %39 = sbr.rel (0) target = $region17
    $region16: #{tpu_custom_call.1} parent=1 // pred_region
      %s41 = ssub.s32 256, 256
      %42 = vsyncadd [#allocation6], %s41
      %s43 = sshll.u32 [#allocation7], 4
      %s44 = int_to_ptr.vmem [resolvable:$true] %s43
      %49 = dma.hbm_to_vmem [thread:$0]  %s3, 256, %s44, [#allocation6], 128, 128, 8
    $region17: #{tpu_custom_call.1} parent=1 // pred_fallthru
      _
    // Predicated region
    $region18: #{tpu_custom_call.1} parent=1 // pred_check
      _
    $region19: #{tpu_custom_call.1} parent=1 // pred_check_branch
      %51 = sbr.rel (0) target = $region21
    $region20: #{tpu_custom_call.1} parent=1 // pred_region
      %52 = dma.done [#allocation3], 128
    $region21: #{tpu_custom_call.1} parent=1 // pred_fallthru
      _
    // Predicated region
    $region22: #{tpu_custom_call.1} parent=1 // pred_check
      _
    $region23: #{tpu_custom_call.1} parent=1 // pred_check_branch
      %54 = sbr.rel (0) target = $region25
    $region24: #{tpu_custom_call.1} parent=1 // pred_region
      %55 = dma.done [#allocation6], 192
    $region25: #{tpu_custom_call.1} parent=1 // pred_fallthru
      _
    // Predicated region
    $region26: #{tpu_custom_call.1} parent=1 // pred_check
      _
    $region27: #{tpu_custom_call.1} parent=1 // pred_check_branch
      %57 = sbr.rel (0) target = $region29
    $region28: #{tpu_custom_call.1} parent=1 // pred_region
      %58 = dma.done [#allocation6], 256
    $region29: #{tpu_custom_call.1} parent=1 // pred_fallthru
      _
    %v60 = vld [vmem:[#allocation2] sm:$0xf]
    %v61 = vld [vmem:[#allocation2 + $0x4] sm:$0xf]
    %v62 = vld [vmem:[#allocation5] sm:$0xf]
    %v63 = vld [vmem:[#allocation5 + $0x4] sm:$0xf]
    %v64 = vld [vmem:[#allocation5 + $0x8] sm:$0x3]
    %v65 = vld [vmem:[%s2] sm:$0x1]
    %v67 = vlaneseq
    %v68 = vshrl.u32 %v67, 7
    %v69 = vsub.s32 0, %v68
    %v70 = vrot.slane %v65, %v69
    %v74 = vunpack.c.l.b16 %v60
    %v75 = vunpack.c.l.b16 %v61
    %v76 = vpack.c.b16 %v75, %v74
    %v80 = vunpack.c.l.b16 %v62
    %v81 = vunpack.c.l.b16 %v63
    %v82 = vunpack.c.l.b16 %v64
    %v83 = vpack.c.b16 %v81, %v80
    %v84 = vpack.c.b16 %v82, %v82
    %vm86 = vcmask 162816
    %v88 = vsel %vm86, %v76, 0
    %vm90 = vcmask 1041408
    %v92 = vsel %vm90, %v84, 0
    %94 = vmatprep.subr.bf16.mxu0 0
    %95 = vmatpush1.bf16.msra.mxu0 %v83
    %96 = vmatprep.subr.bf16.mxu0 0
    %97 = vmatpush1.bf16.msra.mxu0 %v92
    %98 = vmatprep.subr.bf16.mxu0 0
    %99 = vmatpush1.bf16.msra.mxu0 0
    %100 = vmatprep.subr.bf16.mxu0 0
    %101 = vmatpush1.bf16.msra.mxu0 0
    %102 = vmatprep.subr.bf16.mxu0 0
    %103 = vmatpush1.bf16.msra.mxu0 0
    %104 = vmatprep.subr.bf16.mxu0 0
    %105 = vmatpush1.bf16.msra.mxu0 0
    %106 = vmatprep.subr.bf16.mxu0 0
    %107 = vmatpush1.bf16.msra.mxu0 0
    %108 = vmatprep.subr.bf16.mxu0 0
    %109 = vmatpush1.bf16.msra.mxu0 0
    %110 = vmatprep.subr.bf16.mxu0 0
    %111 = vmatpush1.bf16.msra.mxu0 0
    %112 = vmatprep.subr.bf16.mxu0 0
    %113 = vmatpush1.bf16.msra.mxu0 0
    %114 = vmatprep.subr.bf16.mxu0 0
    %115 = vmatpush1.bf16.msra.mxu0 0
    %116 = vmatprep.subr.bf16.mxu0 0
    %117 = vmatpush1.bf16.msra.mxu0 0
    %118 = vmatprep.subr.bf16.mxu0 0
    %119 = vmatpush1.bf16.msra.mxu0 0
    %120 = vmatprep.subr.bf16.mxu0 0
    %121 = vmatpush1.bf16.msra.mxu0 0
    %122 = vmatprep.subr.bf16.mxu0 0
    %123 = vmatpush1.bf16.msra.mxu0 0
    %124 = vmatprep.subr.bf16.mxu0 0
    %125 = vmatpush1.bf16.msra.mxu0 0
    %126 = vmatprep.mubr.bf16.mxu0 0
    %127 = vmatmul.mubr.bf16.gmra.mrb[0].mxu0 %v88
    %v128 = vpop.f32.mrb[0].mxu0
    %v129 = vadd.f32 %v70, %v128
    %v130 = vpop.f32.mrb[0].mxu0
    %v131 = vpop.f32.mrb[0].mxu0
    %v132 = vadd.f32 %v70, %v131
    %v133 = vpop.f32.mrb[0].mxu0
    %134 = vdwg.mxu0
    %v135 = vld [vmem:[#allocation7] sm:$0xff]
    %v136 = vld [vmem:[#allocation7 + $0x8] sm:$0xff]
    %v137 = vadd.f32 %v129, %v135
    %v138 = vadd.f32 %v132, %v136
    %v139 = vpack.c.bf16 %v138, %v137
    %v141 = vunpack.c.l.b16 %v139
    %v142 = vunpack.c.h.b16 %v139
    %v143 = vpack.c.b16 %v141, %v141
    %v144 = vpack.c.b16 %v142, %v142
    %vm147 = vcmask 257024
    %148 = vst.msk [vmem:[#allocation8] sm:$0xf] %vm147, %v143
    %149 = vst.msk [vmem:[#allocation8 + $0x4] sm:$0xf] %vm147, %v144
    // Predicated region
    $region30: #{tpu_custom_call.1} parent=1 // pred_check
      _
    $region31: #{tpu_custom_call.1} parent=1 // pred_check_branch
      %151 = sbr.rel (0) target = $region33
    $region32: #{tpu_custom_call.1} parent=1 // pred_region
      %s153 = ssub.s32 128, 128
      %154 = vsyncadd [#allocation4], %s153
      %s155 = sshll.u32 [#allocation8], 4
      %s156 = int_to_ptr.vmem [resolvable:$true] %s155
      %161 = dma.vmem_to_hbm [thread:$0]  %s156, 128, %s4, [#allocation4], 64, 64, 4
    $region33: #{tpu_custom_call.1} parent=1 // pred_fallthru
      _
    // Predicated region
    $region34: #{tpu_custom_call.1} parent=1 // pred_check
      _
    $region35: #{tpu_custom_call.1} parent=1 // pred_check_branch
      %163 = sbr.rel (0) target = $region37
    $region36: #{tpu_custom_call.1} parent=1 // pred_region
      %164 = dma.done [#allocation4], 128
    $region37: #{tpu_custom_call.1} parent=1 // pred_fallthru
      _
    %165 = vsyncpa [#allocation3], 1
    %166 = vsyncpa [#allocation6], 1
    %167 = vsyncpa [#allocation4], 1

</llo_original>
